<compile_context>
chip_gen: v6e
topology: v6e:2x2x1
jax: 0.10.0
libtpu: 0.0.40
codegen_flags: <defaults>
</compile_context>

<pallas_src>
import jax
import jax.numpy as jnp
from jax.experimental import pallas as pl
from jax.experimental.pallas import tpu as pltpu


def _lstm_kernel(x_ref, slab_ref, out_ref):
    T, IN = x_ref.shape
    G = slab_ref.shape[1]          # 4H
    H = G // 4
    O = out_ref.shape[0]
    r0 = IN + H

    # --- Static, sublane-aligned views into the packed constant slab. ---
    w_ih = slab_ref[0:IN, :]                       # (IN, 4H)
    w_hh = slab_ref[IN:r0, :]                      # (H, 4H)
    b_g = slab_ref[r0 + 0:r0 + 1, :]               # (1, 4H)
    a_sc = slab_ref[r0 + 1:r0 + 2, :]              # (1, 4H) tanh post-scale
    a_off = slab_ref[r0 + 2:r0 + 3, :]             # (1, 4H) post-offset

    # --- Hoisted input projection: one (T, 4H) matmul for all timesteps. ---
    gates_x = (jnp.dot(x_ref[...], w_ih, preferred_element_type=jnp.float32)
               + b_g)                              # (T, 4H)

    h = jnp.zeros((1, H), jnp.float32)
    c = jnp.zeros((1, H), jnp.float32)

    # --- Serial recurrence, fully unrolled (T is small and static). ---
    # TODO(synk): hold w_hh MXU-weight-stationary (pltpu.matmul_push_rhs once,
    # matmul_acc_lhs/matmul_pop per step) once 1-row-LHS pops are verified to
    # lower on v6e/v7x; jnp.dot re-pushes the (H,4H) RHS every step.
    for t in range(T):
        z = gates_x[t:t + 1, :] + jnp.dot(
            h, w_hh, preferred_element_type=jnp.float32)       # (1, 4H)
        # Pre-scale already folded into weights: act = [sig, sig, tanh, sig].
        act = jnp.tanh(z) * a_sc + a_off
        i_g = act[:, 0 * H:1 * H]
        f_g = act[:, 1 * H:2 * H]
        g_g = act[:, 2 * H:3 * H]
        o_g = act[:, 3 * H:4 * H]
        c = f_g * c + i_g * g_g
        h = o_g * jnp.tanh(c)

    # --- Output head on the VPU/XLU (output_size is tiny): lane-dot, no MXU. ---
    w_lin_rows = slab_ref[r0 + 3:r0 + 3 + O, :]            # (O, 4H)
    b_lin_rows = slab_ref[r0 + 3 + O:r0 + 3 + 2 * O, :]    # (O, 4H), bias in lane 0
    y = jnp.sum(h * w_lin_rows[:, 0:H], axis=-1, keepdims=True)   # (O, 1)
    out_ref[...] = y + b_lin_rows[:, 0:1]


@jax.jit
def lstm_model_forward(x, slab):
    """x: (T, input_size) f32, slab: packed params. Returns (output_size,)."""
    T, IN = x.shape
    R, G = slab.shape
    H = G // 4
    O = (R - IN - H - 3) // 2
    vmem = pl.BlockSpec(memory_space=pltpu.MemorySpace.VMEM)

    out = pl.pallas_call(
        _lstm_kernel,
        out_shape=jax.ShapeDtypeStruct((O, 1), jnp.float32),
        in_specs=[vmem, vmem],
        out_specs=vmem,
    )(x, slab)
    return out[:, 0]


def pack_params(w_ih, w_hh, b_ih, b_hh, w_lin, b_lin):
    """Pack PyTorch-layout LSTM+Linear params into one (IN+H+3+2*O, 4H) slab.

    Also folds the sigmoid pre-scale (sigmoid(z) = 0.5*tanh(0.5 z) + 0.5) into
    the i/f/o gate columns of the weights and bias.
    """
    four_h, in_size = w_ih.shape
    H = four_h // 4
    O = w_lin.shape[0]

    lane = jnp.arange(4 * H)
    is_g = (lane >= 2 * H) & (lane < 3 * H)
    pre = jnp.where(is_g, 1.0, 0.5).astype(jnp.float32)       # gate pre-scale
    a_sc = jnp.where(is_g, 1.0, 0.5).astype(jnp.float32)[None, :]
    a_off = jnp.where(is_g, 0.0, 0.5).astype(jnp.float32)[None, :]

    w_ih_t = (w_ih.T * pre[None, :]).astype(jnp.float32)      # (IN, 4H)
    w_hh_t = (w_hh.T * pre[None, :]).astype(jnp.float32)      # (H, 4H)
    b_g = ((b_ih + b_hh) * pre)[None, :].astype(jnp.float32)  # (1, 4H)

    w_lin_rows = jnp.zeros((O, 4 * H), jnp.float32).at[:, :H].set(w_lin)
    b_lin_rows = jnp.zeros((O, 4 * H), jnp.float32).at[:, 0].set(b_lin)

    return jnp.concatenate(
        [w_ih_t, w_hh_t, b_g, a_sc, a_off, w_lin_rows, b_lin_rows], axis=0)


def _reference_forward(x, w_ih, w_hh, b_ih, b_hh, w_lin, b_lin):
    """Pure-JAX reference mirroring torch.nn.LSTM + Linear, batch=1."""
    H = w_hh.shape[1]

    def step(carry, x_t):
        h, c = carry
        gates = x_t @ w_ih.T + h @ w_hh.T + b_ih + b_hh       # (4H,)
        i_g = jax.nn.sigmoid(gates[0 * H:1 * H])
        f_g = jax.nn.sigmoid(gates[1 * H:2 * H])
        g_g = jnp.tanh(gates[2 * H:3 * H])
        o_g = jax.nn.sigmoid(gates[3 * H:4 * H])
        c = f_g * c + i_g * g_g
        h = o_g * jnp.tanh(c)
        return (h, c), None

    (h, _), _ = jax.lax.scan(step, (jnp.zeros(H), jnp.zeros(H)), x)
    return h @ w_lin.T + b_lin


def init_params(key, input_size, hidden_size, output_size):
    """Deterministic PyTorch-style uniform(-1/sqrt(H), 1/sqrt(H)) init (raw layout)."""
    k = 1.0 / jnp.sqrt(jnp.float32(hidden_size))
    keys = jax.random.split(key, 6)
    w_ih = jax.random.uniform(keys[0], (4 * hidden_size, input_size), jnp.float32, -k, k)
    w_hh = jax.random.uniform(keys[1], (4 * hidden_size, hidden_size), jnp.float32, -k, k)
    b_ih = jax.random.uniform(keys[2], (4 * hidden_size,), jnp.float32, -k, k)
    b_hh = jax.random.uniform(keys[3], (4 * hidden_size,), jnp.float32, -k, k)
    w_lin = jax.random.uniform(keys[4], (output_size, hidden_size), jnp.float32, -k, k)
    b_lin = jax.random.uniform(keys[5], (output_size,), jnp.float32, -k, k)
    return w_ih, w_hh, b_ih, b_hh, w_lin, b_lin


if __name__ == "__main__":
    INPUT_SIZE = 8
    HIDDEN = 32
    OUTPUT = 1
    SEQ = 8

    key = jax.random.PRNGKey(0)
    k_x, k_p = jax.random.split(key)
    x = jax.random.normal(k_x, (SEQ, INPUT_SIZE), jnp.float32)
    raw_params = init_params(k_p, INPUT_SIZE, HIDDEN, OUTPUT)
    slab = pack_params(*raw_params)

    pred = lstm_model_forward(x, slab)
    pred = jax.block_until_ready(pred)

    ref = _reference_forward(x, *raw_params)
    assert pred.shape == (OUTPUT,)
    assert jnp.allclose(pred, ref, atol=1e-5, rtol=1e-5), (pred, ref)

    print("KERNEL_OK")
</pallas_src>

<mosaic_0001>
module attributes {stable_mosaic.version = 11 : i64} {
  func.func @_lstm_kernel(%arg0: memref<8x8xf32, #tpu.memory_space<vmem>>, %arg1: memref<45x128xf32, #tpu.memory_space<vmem>>, %arg2: memref<1x1xf32, #tpu.memory_space<vmem>>) attributes {dimension_semantics = [], scalar_prefetch = 0 : i64, scratch_operands = 0 : i64, tpu.core_type = #tpu.core_type<tc>} {
    %c0 = arith.constant 0 : index
    %c0_0 = arith.constant 0 : index
    %0 = vector.load %arg1[%c0, %c0_0] : memref<45x128xf32, #tpu.memory_space<vmem>>, vector<8x128xf32>
    %c8 = arith.constant 8 : index
    %c0_1 = arith.constant 0 : index
    %1 = vector.load %arg1[%c8, %c0_1] : memref<45x128xf32, #tpu.memory_space<vmem>>, vector<32x128xf32>
    %c40 = arith.constant 40 : index
    %c0_2 = arith.constant 0 : index
    %2 = vector.load %arg1[%c40, %c0_2] : memref<45x128xf32, #tpu.memory_space<vmem>>, vector<1x128xf32>
    %c41 = arith.constant 41 : index
    %c0_3 = arith.constant 0 : index
    %3 = vector.load %arg1[%c41, %c0_3] : memref<45x128xf32, #tpu.memory_space<vmem>>, vector<1x128xf32>
    %c42 = arith.constant 42 : index
    %c0_4 = arith.constant 0 : index
    %4 = vector.load %arg1[%c42, %c0_4] : memref<45x128xf32, #tpu.memory_space<vmem>>, vector<1x128xf32>
    %c0_5 = arith.constant 0 : index
    %c0_6 = arith.constant 0 : index
    %5 = vector.load %arg0[%c0_5, %c0_6] : memref<8x8xf32, #tpu.memory_space<vmem>>, vector<8x8xf32>
    %cst = arith.constant dense<0.000000e+00> : vector<8x128xf32>
    %6 = tpu.matmul %5, %0, %cst {dimension_numbers = #tpu.dot_dimension_numbers<[1], [0], [0], [1], [0, 0, 1, 1], [], []>} : vector<8x8xf32>, vector<8x128xf32>, vector<8x128xf32> -> vector<8x128xf32>
    %7 = vector.broadcast %2 : vector<1x128xf32> to vector<8x128xf32>
    %8 = arith.addf %6, %7 : vector<8x128xf32>
    %cst_7 = arith.constant 0.000000e+00 : f32
    %9 = vector.broadcast %cst_7 : f32 to vector<1x32xf32>
    %cst_8 = arith.constant 0.000000e+00 : f32
    %10 = vector.broadcast %cst_8 : f32 to vector<1x32xf32>
    %11 = vector.extract_strided_slice %8 {offsets = [0, 0], sizes = [1, 128], strides = [1, 1]} : vector<8x128xf32> to vector<1x128xf32>
    %cst_9 = arith.constant dense<0.000000e+00> : vector<1x128xf32>
    %12 = tpu.matmul %9, %1, %cst_9 {dimension_numbers = #tpu.dot_dimension_numbers<[1], [0], [0], [1], [0, 0, 1, 1], [], []>} : vector<1x32xf32>, vector<32x128xf32>, vector<1x128xf32> -> vector<1x128xf32>
    %13 = arith.addf %11, %12 : vector<1x128xf32>
    %14 = math.tanh %13 : vector<1x128xf32>
    %15 = arith.mulf %14, %3 : vector<1x128xf32>
    %16 = arith.addf %15, %4 : vector<1x128xf32>
    %17 = vector.extract_strided_slice %16 {offsets = [0, 0], sizes = [1, 32], strides = [1, 1]} : vector<1x128xf32> to vector<1x32xf32>
    %18 = vector.extract_strided_slice %16 {offsets = [0, 32], sizes = [1, 32], strides = [1, 1]} : vector<1x128xf32> to vector<1x32xf32>
    %19 = vector.extract_strided_slice %16 {offsets = [0, 64], sizes = [1, 32], strides = [1, 1]} : vector<1x128xf32> to vector<1x32xf32>
    %20 = vector.extract_strided_slice %16 {offsets = [0, 96], sizes = [1, 32], strides = [1, 1]} : vector<1x128xf32> to vector<1x32xf32>
    %21 = arith.mulf %18, %10 : vector<1x32xf32>
    %22 = arith.mulf %17, %19 : vector<1x32xf32>
    %23 = arith.addf %21, %22 : vector<1x32xf32>
    %24 = math.tanh %23 : vector<1x32xf32>
    %25 = arith.mulf %20, %24 : vector<1x32xf32>
    %26 = vector.extract_strided_slice %8 {offsets = [1, 0], sizes = [1, 128], strides = [1, 1]} : vector<8x128xf32> to vector<1x128xf32>
    %cst_10 = arith.constant dense<0.000000e+00> : vector<1x128xf32>
    %27 = tpu.matmul %25, %1, %cst_10 {dimension_numbers = #tpu.dot_dimension_numbers<[1], [0], [0], [1], [0, 0, 1, 1], [], []>} : vector<1x32xf32>, vector<32x128xf32>, vector<1x128xf32> -> vector<1x128xf32>
    %28 = arith.addf %26, %27 : vector<1x128xf32>
    %29 = math.tanh %28 : vector<1x128xf32>
    %30 = arith.mulf %29, %3 : vector<1x128xf32>
    %31 = arith.addf %30, %4 : vector<1x128xf32>
    %32 = vector.extract_strided_slice %31 {offsets = [0, 0], sizes = [1, 32], strides = [1, 1]} : vector<1x128xf32> to vector<1x32xf32>
    %33 = vector.extract_strided_slice %31 {offsets = [0, 32], sizes = [1, 32], strides = [1, 1]} : vector<1x128xf32> to vector<1x32xf32>
    %34 = vector.extract_strided_slice %31 {offsets = [0, 64], sizes = [1, 32], strides = [1, 1]} : vector<1x128xf32> to vector<1x32xf32>
    %35 = vector.extract_strided_slice %31 {offsets = [0, 96], sizes = [1, 32], strides = [1, 1]} : vector<1x128xf32> to vector<1x32xf32>
    %36 = arith.mulf %33, %23 : vector<1x32xf32>
    %37 = arith.mulf %32, %34 : vector<1x32xf32>
    %38 = arith.addf %36, %37 : vector<1x32xf32>
    %39 = math.tanh %38 : vector<1x32xf32>
    %40 = arith.mulf %35, %39 : vector<1x32xf32>
    %41 = vector.extract_strided_slice %8 {offsets = [2, 0], sizes = [1, 128], strides = [1, 1]} : vector<8x128xf32> to vector<1x128xf32>
    %cst_11 = arith.constant dense<0.000000e+00> : vector<1x128xf32>
    %42 = tpu.matmul %40, %1, %cst_11 {dimension_numbers = #tpu.dot_dimension_numbers<[1], [0], [0], [1], [0, 0, 1, 1], [], []>} : vector<1x32xf32>, vector<32x128xf32>, vector<1x128xf32> -> vector<1x128xf32>
    %43 = arith.addf %41, %42 : vector<1x128xf32>
    %44 = math.tanh %43 : vector<1x128xf32>
    %45 = arith.mulf %44, %3 : vector<1x128xf32>
    %46 = arith.addf %45, %4 : vector<1x128xf32>
    %47 = vector.extract_strided_slice %46 {offsets = [0, 0], sizes = [1, 32], strides = [1, 1]} : vector<1x128xf32> to vector<1x32xf32>
    %48 = vector.extract_strided_slice %46 {offsets = [0, 32], sizes = [1, 32], strides = [1, 1]} : vector<1x128xf32> to vector<1x32xf32>
    %49 = vector.extract_strided_slice %46 {offsets = [0, 64], sizes = [1, 32], strides = [1, 1]} : vector<1x128xf32> to vector<1x32xf32>
    %50 = vector.extract_strided_slice %46 {offsets = [0, 96], sizes = [1, 32], strides = [1, 1]} : vector<1x128xf32> to vector<1x32xf32>
    %51 = arith.mulf %48, %38 : vector<1x32xf32>
    %52 = arith.mulf %47, %49 : vector<1x32xf32>
    %53 = arith.addf %51, %52 : vector<1x32xf32>
    %54 = math.tanh %53 : vector<1x32xf32>
    %55 = arith.mulf %50, %54 : vector<1x32xf32>
    %56 = vector.extract_strided_slice %8 {offsets = [3, 0], sizes = [1, 128], strides = [1, 1]} : vector<8x128xf32> to vector<1x128xf32>
    %cst_12 = arith.constant dense<0.000000e+00> : vector<1x128xf32>
    %57 = tpu.matmul %55, %1, %cst_12 {dimension_numbers = #tpu.dot_dimension_numbers<[1], [0], [0], [1], [0, 0, 1, 1], [], []>} : vector<1x32xf32>, vector<32x128xf32>, vector<1x128xf32> -> vector<1x128xf32>
    %58 = arith.addf %56, %57 : vector<1x128xf32>
    %59 = math.tanh %58 : vector<1x128xf32>
    %60 = arith.mulf %59, %3 : vector<1x128xf32>
    %61 = arith.addf %60, %4 : vector<1x128xf32>
    %62 = vector.extract_strided_slice %61 {offsets = [0, 0], sizes = [1, 32], strides = [1, 1]} : vector<1x128xf32> to vector<1x32xf32>
    %63 = vector.extract_strided_slice %61 {offsets = [0, 32], sizes = [1, 32], strides = [1, 1]} : vector<1x128xf32> to vector<1x32xf32>
    %64 = vector.extract_strided_slice %61 {offsets = [0, 64], sizes = [1, 32], strides = [1, 1]} : vector<1x128xf32> to vector<1x32xf32>
    %65 = vector.extract_strided_slice %61 {offsets = [0, 96], sizes = [1, 32], strides = [1, 1]} : vector<1x128xf32> to vector<1x32xf32>
    %66 = arith.mulf %63, %53 : vector<1x32xf32>
    %67 = arith.mulf %62, %64 : vector<1x32xf32>
    %68 = arith.addf %66, %67 : vector<1x32xf32>
    %69 = math.tanh %68 : vector<1x32xf32>
    %70 = arith.mulf %65, %69 : vector<1x32xf32>
    %71 = vector.extract_strided_slice %8 {offsets = [4, 0], sizes = [1, 128], strides = [1, 1]} : vector<8x128xf32> to vector<1x128xf32>
    %cst_13 = arith.constant dense<0.000000e+00> : vector<1x128xf32>
    %72 = tpu.matmul %70, %1, %cst_13 {dimension_numbers = #tpu.dot_dimension_numbers<[1], [0], [0], [1], [0, 0, 1, 1], [], []>} : vector<1x32xf32>, vector<32x128xf32>, vector<1x128xf32> -> vector<1x128xf32>
    %73 = arith.addf %71, %72 : vector<1x128xf32>
    %74 = math.tanh %73 : vector<1x128xf32>
    %75 = arith.mulf %74, %3 : vector<1x128xf32>
    %76 = arith.addf %75, %4 : vector<1x128xf32>
    %77 = vector.extract_strided_slice %76 {offsets = [0, 0], sizes = [1, 32], strides = [1, 1]} : vector<1x128xf32> to vector<1x32xf32>
    %78 = vector.extract_strided_slice %76 {offsets = [0, 32], sizes = [1, 32], strides = [1, 1]} : vector<1x128xf32> to vector<1x32xf32>
    %79 = vector.extract_strided_slice %76 {offsets = [0, 64], sizes = [1, 32], strides = [1, 1]} : vector<1x128xf32> to vector<1x32xf32>
    %80 = vector.extract_strided_slice %76 {offsets = [0, 96], sizes = [1, 32], strides = [1, 1]} : vector<1x128xf32> to vector<1x32xf32>
    %81 = arith.mulf %78, %68 : vector<1x32xf32>
    %82 = arith.mulf %77, %79 : vector<1x32xf32>
    %83 = arith.addf %81, %82 : vector<1x32xf32>
    %84 = math.tanh %83 : vector<1x32xf32>
    %85 = arith.mulf %80, %84 : vector<1x32xf32>
    %86 = vector.extract_strided_slice %8 {offsets = [5, 0], sizes = [1, 128], strides = [1, 1]} : vector<8x128xf32> to vector<1x128xf32>
    %cst_14 = arith.constant dense<0.000000e+00> : vector<1x128xf32>
    %87 = tpu.matmul %85, %1, %cst_14 {dimension_numbers = #tpu.dot_dimension_numbers<[1], [0], [0], [1], [0, 0, 1, 1], [], []>} : vector<1x32xf32>, vector<32x128xf32>, vector<1x128xf32> -> vector<1x128xf32>
    %88 = arith.addf %86, %87 : vector<1x128xf32>
    %89 = math.tanh %88 : vector<1x128xf32>
    %90 = arith.mulf %89, %3 : vector<1x128xf32>
    %91 = arith.addf %90, %4 : vector<1x128xf32>
    %92 = vector.extract_strided_slice %91 {offsets = [0, 0], sizes = [1, 32], strides = [1, 1]} : vector<1x128xf32> to vector<1x32xf32>
    %93 = vector.extract_strided_slice %91 {offsets = [0, 32], sizes = [1, 32], strides = [1, 1]} : vector<1x128xf32> to vector<1x32xf32>
    %94 = vector.extract_strided_slice %91 {offsets = [0, 64], sizes = [1, 32], strides = [1, 1]} : vector<1x128xf32> to vector<1x32xf32>
    %95 = vector.extract_strided_slice %91 {offsets = [0, 96], sizes = [1, 32], strides = [1, 1]} : vector<1x128xf32> to vector<1x32xf32>
    %96 = arith.mulf %93, %83 : vector<1x32xf32>
    %97 = arith.mulf %92, %94 : vector<1x32xf32>
    %98 = arith.addf %96, %97 : vector<1x32xf32>
    %99 = math.tanh %98 : vector<1x32xf32>
    %100 = arith.mulf %95, %99 : vector<1x32xf32>
    %101 = vector.extract_strided_slice %8 {offsets = [6, 0], sizes = [1, 128], strides = [1, 1]} : vector<8x128xf32> to vector<1x128xf32>
    %cst_15 = arith.constant dense<0.000000e+00> : vector<1x128xf32>
    %102 = tpu.matmul %100, %1, %cst_15 {dimension_numbers = #tpu.dot_dimension_numbers<[1], [0], [0], [1], [0, 0, 1, 1], [], []>} : vector<1x32xf32>, vector<32x128xf32>, vector<1x128xf32> -> vector<1x128xf32>
    %103 = arith.addf %101, %102 : vector<1x128xf32>
    %104 = math.tanh %103 : vector<1x128xf32>
    %105 = arith.mulf %104, %3 : vector<1x128xf32>
    %106 = arith.addf %105, %4 : vector<1x128xf32>
    %107 = vector.extract_strided_slice %106 {offsets = [0, 0], sizes = [1, 32], strides = [1, 1]} : vector<1x128xf32> to vector<1x32xf32>
    %108 = vector.extract_strided_slice %106 {offsets = [0, 32], sizes = [1, 32], strides = [1, 1]} : vector<1x128xf32> to vector<1x32xf32>
    %109 = vector.extract_strided_slice %106 {offsets = [0, 64], sizes = [1, 32], strides = [1, 1]} : vector<1x128xf32> to vector<1x32xf32>
    %110 = vector.extract_strided_slice %106 {offsets = [0, 96], sizes = [1, 32], strides = [1, 1]} : vector<1x128xf32> to vector<1x32xf32>
    %111 = arith.mulf %108, %98 : vector<1x32xf32>
    %112 = arith.mulf %107, %109 : vector<1x32xf32>
    %113 = arith.addf %111, %112 : vector<1x32xf32>
    %114 = math.tanh %113 : vector<1x32xf32>
    %115 = arith.mulf %110, %114 : vector<1x32xf32>
    %116 = vector.extract_strided_slice %8 {offsets = [7, 0], sizes = [1, 128], strides = [1, 1]} : vector<8x128xf32> to vector<1x128xf32>
    %cst_16 = arith.constant dense<0.000000e+00> : vector<1x128xf32>
    %117 = tpu.matmul %115, %1, %cst_16 {dimension_numbers = #tpu.dot_dimension_numbers<[1], [0], [0], [1], [0, 0, 1, 1], [], []>} : vector<1x32xf32>, vector<32x128xf32>, vector<1x128xf32> -> vector<1x128xf32>
    %118 = arith.addf %116, %117 : vector<1x128xf32>
    %119 = math.tanh %118 : vector<1x128xf32>
    %120 = arith.mulf %119, %3 : vector<1x128xf32>
    %121 = arith.addf %120, %4 : vector<1x128xf32>
    %122 = vector.extract_strided_slice %121 {offsets = [0, 0], sizes = [1, 32], strides = [1, 1]} : vector<1x128xf32> to vector<1x32xf32>
    %123 = vector.extract_strided_slice %121 {offsets = [0, 32], sizes = [1, 32], strides = [1, 1]} : vector<1x128xf32> to vector<1x32xf32>
    %124 = vector.extract_strided_slice %121 {offsets = [0, 64], sizes = [1, 32], strides = [1, 1]} : vector<1x128xf32> to vector<1x32xf32>
    %125 = vector.extract_strided_slice %121 {offsets = [0, 96], sizes = [1, 32], strides = [1, 1]} : vector<1x128xf32> to vector<1x32xf32>
    %126 = arith.mulf %123, %113 : vector<1x32xf32>
    %127 = arith.mulf %122, %124 : vector<1x32xf32>
    %128 = arith.addf %126, %127 : vector<1x32xf32>
    %129 = math.tanh %128 : vector<1x32xf32>
    %130 = arith.mulf %125, %129 : vector<1x32xf32>
    %c43 = arith.constant 43 : index
    %c0_17 = arith.constant 0 : index
    %131 = vector.load %arg1[%c43, %c0_17] : memref<45x128xf32, #tpu.memory_space<vmem>>, vector<1x128xf32>
    %c44 = arith.constant 44 : index
    %c0_18 = arith.constant 0 : index
    %132 = vector.load %arg1[%c44, %c0_18] : memref<45x128xf32, #tpu.memory_space<vmem>>, vector<1x128xf32>
    %133 = vector.extract_strided_slice %131 {offsets = [0, 0], sizes = [1, 32], strides = [1, 1]} : vector<1x128xf32> to vector<1x32xf32>
    %134 = arith.mulf %130, %133 : vector<1x32xf32>
    %cst_19 = arith.constant dense<0.000000e+00> : vector<1xf32>
    %135 = vector.multi_reduction <add>, %134, %cst_19 [1] : vector<1x32xf32> to vector<1xf32>
    %136 = vector.shape_cast %135 : vector<1xf32> to vector<1x1xf32>
    %137 = vector.extract_strided_slice %132 {offsets = [0, 0], sizes = [1, 1], strides = [1, 1]} : vector<1x128xf32> to vector<1x1xf32>
    %138 = arith.addf %136, %137 : vector<1x1xf32>
    %c0_20 = arith.constant 0 : index
    %c0_21 = arith.constant 0 : index
    %139 = vector.load %arg2[%c0_20, %c0_21] : memref<1x1xf32, #tpu.memory_space<vmem>>, vector<1x1xf32>
    tpu.vector_store %arg2[%c0_20, %c0_21], %138 {strides = array<i32>} : memref<1x1xf32, #tpu.memory_space<vmem>>, vector<1x1xf32>,
    return
  }
}

</mosaic_0001>

<llo_original>
// kernel: lstm_model_forward.1
$region0: #{lstm_model_forward.1}
  #allocation0 [shape = 'u32[]', space=smem, size = 0x4, offset = 0x4, fixed_abs, tag = 'smem constant byte address 0x4 - core index']
  #allocation1 [shape = 'u32[144,128]{1,0:T(1,128)}', space=vmem, size = 0x12000, scoped, tag = 'internal scratch']
  %s0 = inlined_call_operand.hbm [shape: f32[8,8], index: 0, kind: input, shape index: {}]
  %s1 = inlined_call_operand.hbm [shape: f32[45,128], index: 1, kind: input, shape index: {}]
  %s2 = inlined_call_operand.hbm [shape: f32[1,1], index: 2, kind: output, shape index: {}]
  %s3 = sld [smem:[#allocation0]]
  $region26: #{lstm_model_forward.1} parent=0
    _
  %s5 = ssub.s32 1, %s3
  %s6 = scalar_select 0, %s5, %s3
  $region1: #{lstm_model_forward.1} parent=0
    #allocation2 [shape = 'u8[4096]{0}', space=vmem, size = 0x1000, scoped, tag = 'input window, operand 0, single buffered']
    #allocation3 [shape = 's32[1]{0}', space=sflag, size = 0x4, scoped, tag = 'scoped memory for lstm_model_forward.1']
    #allocation4 [shape = 's32[1]{0}', space=sflag, size = 0x4, scoped, tag = 'scoped memory for lstm_model_forward.1']
    #allocation5 [shape = 'u8[24576]{0}', space=vmem, size = 0x6000, scoped, tag = 'input window, operand 1, single buffered']
    #allocation6 [shape = 's32[1]{0}', space=sflag, size = 0x4, scoped, tag = 'scoped memory for lstm_model_forward.1']
    #allocation7 [shape = 'u8[512]{0}', space=vmem, size = 0x400, scoped, tag = 'output window, operand 0, single buffered']
    %7 = vsyncpa [#allocation3], 0
    %8 = vsyncpa [#allocation6], 0
    %9 = vsyncpa [#allocation4], 0
    // Predicated region
    $region2: #{lstm_model_forward.1} parent=1 // pred_check
      _
    $region3: #{lstm_model_forward.1} parent=1 // pred_check_branch
      %11 = sbr.rel (0) target = $region5
    $region4: #{lstm_model_forward.1} parent=1 // pred_region
      %s13 = ssub.s32 128, 128
      %14 = vsyncadd [#allocation3], %s13
      %s16 = sshll.u32 [#allocation2], 4
      %s17 = int_to_ptr.vmem [resolvable:$true] %s16
      %19 = dma.hbm_to_vmem [thread:$0]  %s0, 128, %s17, [#allocation3]
    $region5: #{lstm_model_forward.1} parent=1 // pred_fallthru
      _
    // Predicated region
    $region6: #{lstm_model_forward.1} parent=1 // pred_check
      _
    $region7: #{lstm_model_forward.1} parent=1 // pred_check_branch
      %21 = sbr.rel (0) target = $region9
    $region8: #{lstm_model_forward.1} parent=1 // pred_region
      %s23 = ssub.s32 768, 768
      %24 = vsyncadd [#allocation6], %s23
      %s25 = sshll.u32 [#allocation5], 4
      %s26 = int_to_ptr.vmem [resolvable:$true] %s25
      %31 = dma.hbm_to_vmem [thread:$0]  %s1, 768, %s26, [#allocation6], 128, 128, 8
    $region9: #{lstm_model_forward.1} parent=1 // pred_fallthru
      _
    // Predicated region
    $region10: #{lstm_model_forward.1} parent=1 // pred_check
      _
    $region11: #{lstm_model_forward.1} parent=1 // pred_check_branch
      %33 = sbr.rel (0) target = $region13
    $region12: #{lstm_model_forward.1} parent=1 // pred_region
      %34 = dma.done [#allocation3], 128
    $region13: #{lstm_model_forward.1} parent=1 // pred_fallthru
      _
    // Predicated region
    $region14: #{lstm_model_forward.1} parent=1 // pred_check
      _
    $region15: #{lstm_model_forward.1} parent=1 // pred_check_branch
      %36 = sbr.rel (0) target = $region17
    $region16: #{lstm_model_forward.1} parent=1 // pred_region
      %37 = dma.done [#allocation6], 768
    $region17: #{lstm_model_forward.1} parent=1 // pred_fallthru
      _
    %v38 = vld [vmem:[#allocation5] sm:$0xff]
    %v39 = vld [vmem:[#allocation5 + $0x8] sm:$0xff]
    %v40 = vld [vmem:[#allocation5 + $0x10] sm:$0xff]
    %v41 = vld [vmem:[#allocation5 + $0x18] sm:$0xff]
    %v42 = vld [vmem:[#allocation5 + $0x20] sm:$0xff]
    %v43 = vld [vmem:[#allocation5 + $0x28] sm:$0x1]
    %v44 = vld [vmem:[#allocation5 + $0x29] sm:$0x1]
    %v45 = vld [vmem:[#allocation5 + $0x2a] sm:$0x1]
    %v46 = vld [vmem:[#allocation2] sm:$0xff]
    %v47 = vlaneseq
    %v48 = vshrl.u32 %v47, 7
    %v49 = vsub.s32 0, %v48
    %v50 = vrot.slane %v43, %v49
    %vm51 = vcmask 64512
    %v53 = vsel %vm51, %v46, 0
    %55 = vmatprep.subr.mxu0 0.0
    %56 = vmatpush1.msra.mxu0 0.0
    %57 = vmatprep.subr.mxu0 0.0
    %58 = vmatpush1.msra.mxu0 0.0
    %59 = vmatprep.subr.mxu0 0.0
    %60 = vmatpush1.msra.mxu0 0.0
    %61 = vmatprep.subr.mxu0 0.0
    %62 = vmatpush1.msra.mxu0 0.0
    %63 = vmatprep.subr.mxu0 0.0
    %64 = vmatpush1.msra.mxu0 0.0
    %65 = vmatprep.subr.mxu0 0.0
    %66 = vmatpush1.msra.mxu0 0.0
    %67 = vmatprep.subr.mxu0 0.0
    %68 = vmatpush1.msra.mxu0 0.0
    %69 = vmatprep.subr.mxu0 0.0
    %70 = vmatpush1.msra.mxu0 0.0
    %71 = vmatprep.subr.mxu0 0.0
    %72 = vmatpush1.msra.mxu0 0.0
    %73 = vmatprep.subr.mxu0 0.0
    %74 = vmatpush1.msra.mxu0 0.0
    %75 = vmatprep.subr.mxu0 0.0
    %76 = vmatpush1.msra.mxu0 0.0
    %77 = vmatprep.subr.mxu0 0.0
    %78 = vmatpush1.msra.mxu0 0.0
    %79 = vmatprep.subr.mxu0 0.0
    %80 = vmatpush1.msra.mxu0 0.0
    %81 = vmatprep.subr.mxu0 0.0
    %82 = vmatpush1.msra.mxu0 0.0
    %83 = vmatprep.subr.mxu0 0.0
    %84 = vmatpush1.msra.mxu0 0.0
    %85 = vmatprep.subr.mxu0 0.0
    %86 = vmatpush1.msra.mxu0 %v38
    %87 = vmatprep.subr.mxu0 0.0
    %88 = vmatpush2.msra.mxu0 0.0
    %89 = vmatprep.subr.mxu0 0.0
    %90 = vmatpush2.msra.mxu0 0.0
    %91 = vmatprep.subr.mxu0 0.0
    %92 = vmatpush2.msra.mxu0 0.0
    %93 = vmatprep.subr.mxu0 0.0
    %94 = vmatpush2.msra.mxu0 0.0
    %95 = vmatprep.subr.mxu0 0.0
    %96 = vmatpush2.msra.mxu0 0.0
    %97 = vmatprep.subr.mxu0 0.0
    %98 = vmatpush2.msra.mxu0 0.0
    %99 = vmatprep.subr.mxu0 0.0
    %100 = vmatpush2.msra.mxu0 0.0
    %101 = vmatprep.subr.mxu0 0.0
    %102 = vmatpush2.msra.mxu0 0.0
    %103 = vmatprep.subr.mxu0 0.0
    %104 = vmatpush2.msra.mxu0 0.0
    %105 = vmatprep.subr.mxu0 0.0
    %106 = vmatpush2.msra.mxu0 0.0
    %107 = vmatprep.subr.mxu0 0.0
    %108 = vmatpush2.msra.mxu0 0.0
    %109 = vmatprep.subr.mxu0 0.0
    %110 = vmatpush2.msra.mxu0 0.0
    %111 = vmatprep.subr.mxu0 0.0
    %112 = vmatpush2.msra.mxu0 0.0
    %113 = vmatprep.subr.mxu0 0.0
    %114 = vmatpush2.msra.mxu0 0.0
    %115 = vmatprep.subr.mxu0 0.0
    %116 = vmatpush2.msra.mxu0 0.0
    %117 = vmatprep.subr.mxu0 0.0
    %118 = vmatpush2.msra.mxu0 0.0
    %119 = vmatprep.mubr.f32.mxu0 0.0
    %120 = vmatmul.mubr.f32.gmra.mxu0 %v53
    %v121 = vpop.f32.mrf.mxu0
    %v122 = vadd.f32 %v50, %v121
    %v123 = vpop.f32.mrf.mxu0
    %124 = vdwg.mxu0
    %vm125 = vcmask 261120
    %v127 = vsel %vm125, 0.0, 0
    %129 = vmatprep.subr.mxu0 0.0
    %130 = vmatpush1.msra.mxu0 0.0
    %131 = vmatprep.subr.mxu0 0.0
    %132 = vmatpush1.msra.mxu0 0.0
    %133 = vmatprep.subr.mxu0 0.0
    %134 = vmatpush1.msra.mxu0 0.0
    %135 = vmatprep.subr.mxu0 0.0
    %136 = vmatpush1.msra.mxu0 0.0
    %137 = vmatprep.subr.mxu0 0.0
    %138 = vmatpush1.msra.mxu0 0.0
    %139 = vmatprep.subr.mxu0 0.0
    %140 = vmatpush1.msra.mxu0 0.0
    %141 = vmatprep.subr.mxu0 0.0
    %142 = vmatpush1.msra.mxu0 0.0
    %143 = vmatprep.subr.mxu0 0.0
    %144 = vmatpush1.msra.mxu0 0.0
    %145 = vmatprep.subr.mxu0 0.0
    %146 = vmatpush1.msra.mxu0 0.0
    %147 = vmatprep.subr.mxu0 0.0
    %148 = vmatpush1.msra.mxu0 0.0
    %149 = vmatprep.subr.mxu0 0.0
    %150 = vmatpush1.msra.mxu0 0.0
    %151 = vmatprep.subr.mxu0 0.0
    %152 = vmatpush1.msra.mxu0 0.0
    %153 = vmatprep.subr.mxu0 0.0
    %154 = vmatpush1.msra.mxu0 %v42
    %155 = vmatprep.subr.mxu0 0.0
    %156 = vmatpush1.msra.mxu0 %v41
    %157 = vmatprep.subr.mxu0 0.0
    %158 = vmatpush1.msra.mxu0 %v40
    %159 = vmatprep.subr.mxu0 0.0
    %160 = vmatpush1.msra.mxu0 %v39
    %161 = vmatprep.subr.mxu0 0.0
    %162 = vmatpush2.msra.mxu0 0.0
    %163 = vmatprep.subr.mxu0 0.0
    %164 = vmatpush2.msra.mxu0 0.0
    %165 = vmatprep.subr.mxu0 0.0
    %166 = vmatpush2.msra.mxu0 0.0
    %167 = vmatprep.subr.mxu0 0.0
    %168 = vmatpush2.msra.mxu0 0.0
    %169 = vmatprep.subr.mxu0 0.0
    %170 = vmatpush2.msra.mxu0 0.0
    %171 = vmatprep.subr.mxu0 0.0
    %172 = vmatpush2.msra.mxu0 0.0
    %173 = vmatprep.subr.mxu0 0.0
    %174 = vmatpush2.msra.mxu0 0.0
    %175 = vmatprep.subr.mxu0 0.0
    %176 = vmatpush2.msra.mxu0 0.0
    %177 = vmatprep.subr.mxu0 0.0
    %178 = vmatpush2.msra.mxu0 0.0
    %179 = vmatprep.subr.mxu0 0.0
    %180 = vmatpush2.msra.mxu0 0.0
    %181 = vmatprep.subr.mxu0 0.0
    %182 = vmatpush2.msra.mxu0 0.0
    %183 = vmatprep.subr.mxu0 0.0
    %184 = vmatpush2.msra.mxu0 0.0
    %185 = vmatprep.subr.mxu0 0.0
    %186 = vmatpush2.msra.mxu0 0.0
    %187 = vmatprep.subr.mxu0 0.0
    %188 = vmatpush2.msra.mxu0 0.0
    %189 = vmatprep.subr.mxu0 0.0
    %190 = vmatpush2.msra.mxu0 0.0
    %191 = vmatprep.subr.mxu0 0.0
    %192 = vmatpush2.msra.mxu0 0.0
    %193 = vmatprep.mubr.f32.mxu0 0.0
    %194 = vmatmul.mubr.f32.gmra.mxu0 %v127
    %v195 = vpop.f32.mrf.mxu0
    %v196 = vadd.f32 0.0, %v195
    %v197 = vpop.f32.mrf.mxu0
    %198 = vdwg.mxu0
    %v199 = vadd.f32 %v122, %v196
    %v200 = vtanh.pop %v199
    %v201 = vmul.f32 %v200, %v44
    %v202 = vadd.f32 %v201, %v45
    %v203 = vmul.f32 %v202, 0.0
    %205 = vrot.lane.b32.xlu0 %v202, 64
    %v206 = vpop.permute.xlu0 %205
    %v208 = vmul.f32 %v202, %v206
    %210 = vrot.lane.b32.xlu0 %v208, 32
    %v211 = vpop.permute.xlu0 %210
    %v213 = vadd.f32 %v203, %v211
    %v214 = vtanh.pop %v213
    %216 = vrot.lane.b32.xlu0 %v214, 64
    %v217 = vpop.permute.xlu0 %216
    %v219 = vmul.f32 %v202, %v217
    %221 = vrot.lane.b32.xlu0 %v219, 32
    %v222 = vpop.permute.xlu0 %221
    %v223 = vsel %vm125, %v222, 0
    %225 = vmatprep.subr.mxu0 0.0
    %226 = vmatpush1.msra.mxu0 0.0
    %227 = vmatprep.subr.mxu0 0.0
    %228 = vmatpush1.msra.mxu0 0.0
    %229 = vmatprep.subr.mxu0 0.0
    %230 = vmatpush1.msra.mxu0 0.0
    %231 = vmatprep.subr.mxu0 0.0
    %232 = vmatpush1.msra.mxu0 0.0
    %233 = vmatprep.subr.mxu0 0.0
    %234 = vmatpush1.msra.mxu0 0.0
    %235 = vmatprep.subr.mxu0 0.0
    %236 = vmatpush1.msra.mxu0 0.0
    %237 = vmatprep.subr.mxu0 0.0
    %238 = vmatpush1.msra.mxu0 0.0
    %239 = vmatprep.subr.mxu0 0.0
    %240 = vmatpush1.msra.mxu0 0.0
    %241 = vmatprep.subr.mxu0 0.0
    %242 = vmatpush1.msra.mxu0 0.0
    %243 = vmatprep.subr.mxu0 0.0
    %244 = vmatpush1.msra.mxu0 0.0
    %245 = vmatprep.subr.mxu0 0.0
    %246 = vmatpush1.msra.mxu0 0.0
    %247 = vmatprep.subr.mxu0 0.0
    %248 = vmatpush1.msra.mxu0 0.0
    %249 = vmatprep.subr.mxu0 0.0
    %250 = vmatpush1.msra.mxu0 %v42
    %251 = vmatprep.subr.mxu0 0.0
    %252 = vmatpush1.msra.mxu0 %v41
    %253 = vmatprep.subr.mxu0 0.0
    %254 = vmatpush1.msra.mxu0 %v40
    %255 = vmatprep.subr.mxu0 0.0
    %256 = vmatpush1.msra.mxu0 %v39
    %257 = vmatprep.subr.mxu0 0.0
    %258 = vmatpush2.msra.mxu0 0.0
    %259 = vmatprep.subr.mxu0 0.0
    %260 = vmatpush2.msra.mxu0 0.0
    %261 = vmatprep.subr.mxu0 0.0
    %262 = vmatpush2.msra.mxu0 0.0
    %263 = vmatprep.subr.mxu0 0.0
    %264 = vmatpush2.msra.mxu0 0.0
    %265 = vmatprep.subr.mxu0 0.0
    %266 = vmatpush2.msra.mxu0 0.0
    %267 = vmatprep.subr.mxu0 0.0
    %268 = vmatpush2.msra.mxu0 0.0
    %269 = vmatprep.subr.mxu0 0.0
    %270 = vmatpush2.msra.mxu0 0.0
    %271 = vmatprep.subr.mxu0 0.0
    %272 = vmatpush2.msra.mxu0 0.0
    %273 = vmatprep.subr.mxu0 0.0
    %274 = vmatpush2.msra.mxu0 0.0
    %275 = vmatprep.subr.mxu0 0.0
    %276 = vmatpush2.msra.mxu0 0.0
    %277 = vmatprep.subr.mxu0 0.0
    %278 = vmatpush2.msra.mxu0 0.0
    %279 = vmatprep.subr.mxu0 0.0
    %280 = vmatpush2.msra.mxu0 0.0
    %281 = vmatprep.subr.mxu0 0.0
    %282 = vmatpush2.msra.mxu0 0.0
    %283 = vmatprep.subr.mxu0 0.0
    %284 = vmatpush2.msra.mxu0 0.0
    %285 = vmatprep.subr.mxu0 0.0
    %286 = vmatpush2.msra.mxu0 0.0
    %287 = vmatprep.subr.mxu0 0.0
    %288 = vmatpush2.msra.mxu0 0.0
    %289 = vmatprep.mubr.f32.mxu0 0.0
    %290 = vmatmul.mubr.f32.gmra.mxu0 %v223
    %v291 = vpop.f32.mrf.mxu0
    %v292 = vadd.f32 0.0, %v291
    %v293 = vpop.f32.mrf.mxu0
    %294 = vdwg.mxu0
    %v296 = vrot.slane %v292, 7
    %v298 = vadd.f32 %v122, %v296
    %v299 = vtanh.pop %v298
    %v301 = vrot.slane %v44, 7
    %v303 = vmul.f32 %v299, %v301
    %v305 = vrot.slane %v45, 7
    %v307 = vadd.f32 %v303, %v305
    %v309 = vrot.slane %v213, 7
    %v311 = vmul.f32 %v307, %v309
    %313 = vrot.lane.b32.xlu0 %v307, 64
    %v314 = vpop.permute.xlu0 %313
    %v316 = vmul.f32 %v307, %v314
    %318 = vrot.lane.b32.xlu0 %v316, 32
    %v319 = vpop.permute.xlu0 %318
    %v321 = vadd.f32 %v311, %v319
    %v322 = vtanh.pop %v321
    %324 = vrot.lane.b32.xlu0 %v322, 64
    %v325 = vpop.permute.xlu0 %324
    %v327 = vmul.f32 %v307, %v325
    %v329 = vrot.slane %v327, 1
    %330 = vrot.lane.b32.xlu0 %v329, 32
    %v331 = vpop.permute.xlu0 %330
    %v332 = vsel %vm125, %v331, 0
    %334 = vmatprep.subr.mxu0 0.0
    %335 = vmatpush1.msra.mxu0 0.0
    %336 = vmatprep.subr.mxu0 0.0
    %337 = vmatpush1.msra.mxu0 0.0
    %338 = vmatprep.subr.mxu0 0.0
    %339 = vmatpush1.msra.mxu0 0.0
    %340 = vmatprep.subr.mxu0 0.0
    %341 = vmatpush1.msra.mxu0 0.0
    %342 = vmatprep.subr.mxu0 0.0
    %343 = vmatpush1.msra.mxu0 0.0
    %344 = vmatprep.subr.mxu0 0.0
    %345 = vmatpush1.msra.mxu0 0.0
    %346 = vmatprep.subr.mxu0 0.0
    %347 = vmatpush1.msra.mxu0 0.0
    %348 = vmatprep.subr.mxu0 0.0
    %349 = vmatpush1.msra.mxu0 0.0
    %350 = vmatprep.subr.mxu0 0.0
    %351 = vmatpush1.msra.mxu0 0.0
    %352 = vmatprep.subr.mxu0 0.0
    %353 = vmatpush1.msra.mxu0 0.0
    %354 = vmatprep.subr.mxu0 0.0
    %355 = vmatpush1.msra.mxu0 0.0
    %356 = vmatprep.subr.mxu0 0.0
    %357 = vmatpush1.msra.mxu0 0.0
    %358 = vmatprep.subr.mxu0 0.0
    %359 = vmatpush1.msra.mxu0 %v42
    %360 = vmatprep.subr.mxu0 0.0
    %361 = vmatpush1.msra.mxu0 %v41
    %362 = vmatprep.subr.mxu0 0.0
    %363 = vmatpush1.msra.mxu0 %v40
    %364 = vmatprep.subr.mxu0 0.0
    %365 = vmatpush1.msra.mxu0 %v39
    %366 = vmatprep.subr.mxu0 0.0
    %367 = vmatpush2.msra.mxu0 0.0
    %368 = vmatprep.subr.mxu0 0.0
    %369 = vmatpush2.msra.mxu0 0.0
    %370 = vmatprep.subr.mxu0 0.0
    %371 = vmatpush2.msra.mxu0 0.0
    %372 = vmatprep.subr.mxu0 0.0
    %373 = vmatpush2.msra.mxu0 0.0
    %374 = vmatprep.subr.mxu0 0.0
    %375 = vmatpush2.msra.mxu0 0.0
    %376 = vmatprep.subr.mxu0 0.0
    %377 = vmatpush2.msra.mxu0 0.0
    %378 = vmatprep.subr.mxu0 0.0
    %379 = vmatpush2.msra.mxu0 0.0
    %380 = vmatprep.subr.mxu0 0.0
    %381 = vmatpush2.msra.mxu0 0.0
    %382 = vmatprep.subr.mxu0 0.0
    %383 = vmatpush2.msra.mxu0 0.0
    %384 = vmatprep.subr.mxu0 0.0
    %385 = vmatpush2.msra.mxu0 0.0
    %386 = vmatprep.subr.mxu0 0.0
    %387 = vmatpush2.msra.mxu0 0.0
    %388 = vmatprep.subr.mxu0 0.0
    %389 = vmatpush2.msra.mxu0 0.0
    %390 = vmatprep.subr.mxu0 0.0
    %391 = vmatpush2.msra.mxu0 0.0
    %392 = vmatprep.subr.mxu0 0.0
    %393 = vmatpush2.msra.mxu0 0.0
    %394 = vmatprep.subr.mxu0 0.0
    %395 = vmatpush2.msra.mxu0 0.0
    %396 = vmatprep.subr.mxu0 0.0
    %397 = vmatpush2.msra.mxu0 0.0
    %398 = vmatprep.mubr.f32.mxu0 0.0
    %399 = vmatmul.mubr.f32.gmra.mxu0 %v332
    %v400 = vpop.f32.mrf.mxu0
    %v401 = vadd.f32 0.0, %v400
    %v402 = vpop.f32.mrf.mxu0
    %403 = vdwg.mxu0
    %v405 = vrot.slane %v401, 6
    %v407 = vadd.f32 %v122, %v405
    %v408 = vtanh.pop %v407
    %v409 = vrot.slane %v44, 6
    %v411 = vmul.f32 %v408, %v409
    %v412 = vrot.slane %v45, 6
    %v414 = vadd.f32 %v411, %v412
    %v416 = vrot.slane %v321, 7
    %v418 = vmul.f32 %v414, %v416
    %420 = vrot.lane.b32.xlu0 %v414, 64
    %v421 = vpop.permute.xlu0 %420
    %v423 = vmul.f32 %v414, %v421
    %425 = vrot.lane.b32.xlu0 %v423, 32
    %v426 = vpop.permute.xlu0 %425
    %v428 = vadd.f32 %v418, %v426
    %v429 = vtanh.pop %v428
    %431 = vrot.lane.b32.xlu0 %v429, 64
    %v432 = vpop.permute.xlu0 %431
    %v434 = vmul.f32 %v414, %v432
    %v436 = vrot.slane %v434, 2
    %437 = vrot.lane.b32.xlu0 %v436, 32
    %v438 = vpop.permute.xlu0 %437
    %v439 = vsel %vm125, %v438, 0
    %441 = vmatprep.subr.mxu0 0.0
    %442 = vmatpush1.msra.mxu0 0.0
    %443 = vmatprep.subr.mxu0 0.0
    %444 = vmatpush1.msra.mxu0 0.0
    %445 = vmatprep.subr.mxu0 0.0
    %446 = vmatpush1.msra.mxu0 0.0
    %447 = vmatprep.subr.mxu0 0.0
    %448 = vmatpush1.msra.mxu0 0.0
    %449 = vmatprep.subr.mxu0 0.0
    %450 = vmatpush1.msra.mxu0 0.0
    %451 = vmatprep.subr.mxu0 0.0
    %452 = vmatpush1.msra.mxu0 0.0
    %453 = vmatprep.subr.mxu0 0.0
    %454 = vmatpush1.msra.mxu0 0.0
    %455 = vmatprep.subr.mxu0 0.0
    %456 = vmatpush1.msra.mxu0 0.0
    %457 = vmatprep.subr.mxu0 0.0
    %458 = vmatpush1.msra.mxu0 0.0
    %459 = vmatprep.subr.mxu0 0.0
    %460 = vmatpush1.msra.mxu0 0.0
    %461 = vmatprep.subr.mxu0 0.0
    %462 = vmatpush1.msra.mxu0 0.0
    %463 = vmatprep.subr.mxu0 0.0
    %464 = vmatpush1.msra.mxu0 0.0
    %465 = vmatprep.subr.mxu0 0.0
    %466 = vmatpush1.msra.mxu0 %v42
    %467 = vmatprep.subr.mxu0 0.0
    %468 = vmatpush1.msra.mxu0 %v41
    %469 = vmatprep.subr.mxu0 0.0
    %470 = vmatpush1.msra.mxu0 %v40
    %471 = vmatprep.subr.mxu0 0.0
    %472 = vmatpush1.msra.mxu0 %v39
    %473 = vmatprep.subr.mxu0 0.0
    %474 = vmatpush2.msra.mxu0 0.0
    %475 = vmatprep.subr.mxu0 0.0
    %476 = vmatpush2.msra.mxu0 0.0
    %477 = vmatprep.subr.mxu0 0.0
    %478 = vmatpush2.msra.mxu0 0.0
    %479 = vmatprep.subr.mxu0 0.0
    %480 = vmatpush2.msra.mxu0 0.0
    %481 = vmatprep.subr.mxu0 0.0
    %482 = vmatpush2.msra.mxu0 0.0
    %483 = vmatprep.subr.mxu0 0.0
    %484 = vmatpush2.msra.mxu0 0.0
    %485 = vmatprep.subr.mxu0 0.0
    %486 = vmatpush2.msra.mxu0 0.0
    %487 = vmatprep.subr.mxu0 0.0
    %488 = vmatpush2.msra.mxu0 0.0
    %489 = vmatprep.subr.mxu0 0.0
    %490 = vmatpush2.msra.mxu0 0.0
    %491 = vmatprep.subr.mxu0 0.0
    %492 = vmatpush2.msra.mxu0 0.0
    %493 = vmatprep.subr.mxu0 0.0
    %494 = vmatpush2.msra.mxu0 0.0
    %495 = vmatprep.subr.mxu0 0.0
    %496 = vmatpush2.msra.mxu0 0.0
    %497 = vmatprep.subr.mxu0 0.0
    %498 = vmatpush2.msra.mxu0 0.0
    %499 = vmatprep.subr.mxu0 0.0
    %500 = vmatpush2.msra.mxu0 0.0
    %501 = vmatprep.subr.mxu0 0.0
    %502 = vmatpush2.msra.mxu0 0.0
    %503 = vmatprep.subr.mxu0 0.0
    %504 = vmatpush2.msra.mxu0 0.0
    %505 = vmatprep.mubr.f32.mxu0 0.0
    %506 = vmatmul.mubr.f32.gmra.mxu0 %v439
    %v507 = vpop.f32.mrf.mxu0
    %v508 = vadd.f32 0.0, %v507
    %v509 = vpop.f32.mrf.mxu0
    %510 = vdwg.mxu0
    %v512 = vrot.slane %v508, 5
    %v514 = vadd.f32 %v122, %v512
    %v515 = vtanh.pop %v514
    %v516 = vrot.slane %v44, 5
    %v518 = vmul.f32 %v515, %v516
    %v519 = vrot.slane %v45, 5
    %v521 = vadd.f32 %v518, %v519
    %v523 = vrot.slane %v428, 7
    %v525 = vmul.f32 %v521, %v523
    %527 = vrot.lane.b32.xlu0 %v521, 64
    %v528 = vpop.permute.xlu0 %527
    %v530 = vmul.f32 %v521, %v528
    %532 = vrot.lane.b32.xlu0 %v530, 32
    %v533 = vpop.permute.xlu0 %532
    %v535 = vadd.f32 %v525, %v533
    %v536 = vtanh.pop %v535
    %538 = vrot.lane.b32.xlu0 %v536, 64
    %v539 = vpop.permute.xlu0 %538
    %v541 = vmul.f32 %v521, %v539
    %v543 = vrot.slane %v541, 3
    %544 = vrot.lane.b32.xlu0 %v543, 32
    %v545 = vpop.permute.xlu0 %544
    %v546 = vsel %vm125, %v545, 0
    %548 = vmatprep.subr.mxu0 0.0
    %549 = vmatpush1.msra.mxu0 0.0
    %550 = vmatprep.subr.mxu0 0.0
    %551 = vmatpush1.msra.mxu0 0.0
    %552 = vmatprep.subr.mxu0 0.0
    %553 = vmatpush1.msra.mxu0 0.0
    %554 = vmatprep.subr.mxu0 0.0
    %555 = vmatpush1.msra.mxu0 0.0
    %556 = vmatprep.subr.mxu0 0.0
    %557 = vmatpush1.msra.mxu0 0.0
    %558 = vmatprep.subr.mxu0 0.0
    %559 = vmatpush1.msra.mxu0 0.0
    %560 = vmatprep.subr.mxu0 0.0
    %561 = vmatpush1.msra.mxu0 0.0
    %562 = vmatprep.subr.mxu0 0.0
    %563 = vmatpush1.msra.mxu0 0.0
    %564 = vmatprep.subr.mxu0 0.0
    %565 = vmatpush1.msra.mxu0 0.0
    %566 = vmatprep.subr.mxu0 0.0
    %567 = vmatpush1.msra.mxu0 0.0
    %568 = vmatprep.subr.mxu0 0.0
    %569 = vmatpush1.msra.mxu0 0.0
    %570 = vmatprep.subr.mxu0 0.0
    %571 = vmatpush1.msra.mxu0 0.0
    %572 = vmatprep.subr.mxu0 0.0
    %573 = vmatpush1.msra.mxu0 %v42
    %574 = vmatprep.subr.mxu0 0.0
    %575 = vmatpush1.msra.mxu0 %v41
    %576 = vmatprep.subr.mxu0 0.0
    %577 = vmatpush1.msra.mxu0 %v40
    %578 = vmatprep.subr.mxu0 0.0
    %579 = vmatpush1.msra.mxu0 %v39
    %580 = vmatprep.subr.mxu0 0.0
    %581 = vmatpush2.msra.mxu0 0.0
    %582 = vmatprep.subr.mxu0 0.0
    %583 = vmatpush2.msra.mxu0 0.0
    %584 = vmatprep.subr.mxu0 0.0
    %585 = vmatpush2.msra.mxu0 0.0
    %586 = vmatprep.subr.mxu0 0.0
    %587 = vmatpush2.msra.mxu0 0.0
    %588 = vmatprep.subr.mxu0 0.0
    %589 = vmatpush2.msra.mxu0 0.0
    %590 = vmatprep.subr.mxu0 0.0
    %591 = vmatpush2.msra.mxu0 0.0
    %592 = vmatprep.subr.mxu0 0.0
    %593 = vmatpush2.msra.mxu0 0.0
    %594 = vmatprep.subr.mxu0 0.0
    %595 = vmatpush2.msra.mxu0 0.0
    %596 = vmatprep.subr.mxu0 0.0
    %597 = vmatpush2.msra.mxu0 0.0
    %598 = vmatprep.subr.mxu0 0.0
    %599 = vmatpush2.msra.mxu0 0.0
    %600 = vmatprep.subr.mxu0 0.0
    %601 = vmatpush2.msra.mxu0 0.0
    %602 = vmatprep.subr.mxu0 0.0
    %603 = vmatpush2.msra.mxu0 0.0
    %604 = vmatprep.subr.mxu0 0.0
    %605 = vmatpush2.msra.mxu0 0.0
    %606 = vmatprep.subr.mxu0 0.0
    %607 = vmatpush2.msra.mxu0 0.0
    %608 = vmatprep.subr.mxu0 0.0
    %609 = vmatpush2.msra.mxu0 0.0
    %610 = vmatprep.subr.mxu0 0.0
    %611 = vmatpush2.msra.mxu0 0.0
    %612 = vmatprep.mubr.f32.mxu0 0.0
    %613 = vmatmul.mubr.f32.gmra.mxu0 %v546
    %v614 = vpop.f32.mrf.mxu0
    %v615 = vadd.f32 0.0, %v614
    %v616 = vpop.f32.mrf.mxu0
    %617 = vdwg.mxu0
    %v619 = vrot.slane %v615, 4
    %v621 = vadd.f32 %v122, %v619
    %v622 = vtanh.pop %v621
    %v623 = vrot.slane %v44, 4
    %v625 = vmul.f32 %v622, %v623
    %v626 = vrot.slane %v45, 4
    %v628 = vadd.f32 %v625, %v626
    %v630 = vrot.slane %v535, 7
    %v632 = vmul.f32 %v628, %v630
    %634 = vrot.lane.b32.xlu0 %v628, 64
    %v635 = vpop.permute.xlu0 %634
    %v637 = vmul.f32 %v628, %v635
    %639 = vrot.lane.b32.xlu0 %v637, 32
    %v640 = vpop.permute.xlu0 %639
    %v642 = vadd.f32 %v632, %v640
    %v643 = vtanh.pop %v642
    %645 = vrot.lane.b32.xlu0 %v643, 64
    %v646 = vpop.permute.xlu0 %645
    %v648 = vmul.f32 %v628, %v646
    %v650 = vrot.slane %v648, 4
    %651 = vrot.lane.b32.xlu0 %v650, 32
    %v652 = vpop.permute.xlu0 %651
    %v653 = vsel %vm125, %v652, 0
    %655 = vmatprep.subr.mxu0 0.0
    %656 = vmatpush1.msra.mxu0 0.0
    %657 = vmatprep.subr.mxu0 0.0
    %658 = vmatpush1.msra.mxu0 0.0
    %659 = vmatprep.subr.mxu0 0.0
    %660 = vmatpush1.msra.mxu0 0.0
    %661 = vmatprep.subr.mxu0 0.0
    %662 = vmatpush1.msra.mxu0 0.0
    %663 = vmatprep.subr.mxu0 0.0
    %664 = vmatpush1.msra.mxu0 0.0
    %665 = vmatprep.subr.mxu0 0.0
    %666 = vmatpush1.msra.mxu0 0.0
    %667 = vmatprep.subr.mxu0 0.0
    %668 = vmatpush1.msra.mxu0 0.0
    %669 = vmatprep.subr.mxu0 0.0
    %670 = vmatpush1.msra.mxu0 0.0
    %671 = vmatprep.subr.mxu0 0.0
    %672 = vmatpush1.msra.mxu0 0.0
    %673 = vmatprep.subr.mxu0 0.0
    %674 = vmatpush1.msra.mxu0 0.0
    %675 = vmatprep.subr.mxu0 0.0
    %676 = vmatpush1.msra.mxu0 0.0
    %677 = vmatprep.subr.mxu0 0.0
    %678 = vmatpush1.msra.mxu0 0.0
    %679 = vmatprep.subr.mxu0 0.0
    %680 = vmatpush1.msra.mxu0 %v42
    %681 = vmatprep.subr.mxu0 0.0
    %682 = vmatpush1.msra.mxu0 %v41
    %683 = vmatprep.subr.mxu0 0.0
    %684 = vmatpush1.msra.mxu0 %v40
    %685 = vmatprep.subr.mxu0 0.0
    %686 = vmatpush1.msra.mxu0 %v39
    %687 = vmatprep.subr.mxu0 0.0
    %688 = vmatpush2.msra.mxu0 0.0
    %689 = vmatprep.subr.mxu0 0.0
    %690 = vmatpush2.msra.mxu0 0.0
    %691 = vmatprep.subr.mxu0 0.0
    %692 = vmatpush2.msra.mxu0 0.0
    %693 = vmatprep.subr.mxu0 0.0
    %694 = vmatpush2.msra.mxu0 0.0
    %695 = vmatprep.subr.mxu0 0.0
    %696 = vmatpush2.msra.mxu0 0.0
    %697 = vmatprep.subr.mxu0 0.0
    %698 = vmatpush2.msra.mxu0 0.0
    %699 = vmatprep.subr.mxu0 0.0
    %700 = vmatpush2.msra.mxu0 0.0
    %701 = vmatprep.subr.mxu0 0.0
    %702 = vmatpush2.msra.mxu0 0.0
    %703 = vmatprep.subr.mxu0 0.0
    %704 = vmatpush2.msra.mxu0 0.0
    %705 = vmatprep.subr.mxu0 0.0
    %706 = vmatpush2.msra.mxu0 0.0
    %707 = vmatprep.subr.mxu0 0.0
    %708 = vmatpush2.msra.mxu0 0.0
    %709 = vmatprep.subr.mxu0 0.0
    %710 = vmatpush2.msra.mxu0 0.0
    %711 = vmatprep.subr.mxu0 0.0
    %712 = vmatpush2.msra.mxu0 0.0
    %713 = vmatprep.subr.mxu0 0.0
    %714 = vmatpush2.msra.mxu0 0.0
    %715 = vmatprep.subr.mxu0 0.0
    %716 = vmatpush2.msra.mxu0 0.0
    %717 = vmatprep.subr.mxu0 0.0
    %718 = vmatpush2.msra.mxu0 0.0
    %719 = vmatprep.mubr.f32.mxu0 0.0
    %720 = vmatmul.mubr.f32.gmra.mxu0 %v653
    %v721 = vpop.f32.mrf.mxu0
    %v722 = vadd.f32 0.0, %v721
    %v723 = vpop.f32.mrf.mxu0
    %724 = vdwg.mxu0
    %v726 = vrot.slane %v722, 3
    %v728 = vadd.f32 %v122, %v726
    %v729 = vtanh.pop %v728
    %v730 = vrot.slane %v44, 3
    %v732 = vmul.f32 %v729, %v730
    %v733 = vrot.slane %v45, 3
    %v735 = vadd.f32 %v732, %v733
    %v737 = vrot.slane %v642, 7
    %v739 = vmul.f32 %v735, %v737
    %741 = vrot.lane.b32.xlu0 %v735, 64
    %v742 = vpop.permute.xlu0 %741
    %v744 = vmul.f32 %v735, %v742
    %746 = vrot.lane.b32.xlu0 %v744, 32
    %v747 = vpop.permute.xlu0 %746
    %v749 = vadd.f32 %v739, %v747
    %v750 = vtanh.pop %v749
    %752 = vrot.lane.b32.xlu0 %v750, 64
    %v753 = vpop.permute.xlu0 %752
    %v755 = vmul.f32 %v735, %v753
    %v757 = vrot.slane %v755, 5
    %758 = vrot.lane.b32.xlu0 %v757, 32
    %v759 = vpop.permute.xlu0 %758
    %v760 = vsel %vm125, %v759, 0
    %762 = vmatprep.subr.mxu0 0.0
    %763 = vmatpush1.msra.mxu0 0.0
    %764 = vmatprep.subr.mxu0 0.0
    %765 = vmatpush1.msra.mxu0 0.0
    %766 = vmatprep.subr.mxu0 0.0
    %767 = vmatpush1.msra.mxu0 0.0
    %768 = vmatprep.subr.mxu0 0.0
    %769 = vmatpush1.msra.mxu0 0.0
    %770 = vmatprep.subr.mxu0 0.0
    %771 = vmatpush1.msra.mxu0 0.0
    %772 = vmatprep.subr.mxu0 0.0
    %773 = vmatpush1.msra.mxu0 0.0
    %774 = vmatprep.subr.mxu0 0.0
    %775 = vmatpush1.msra.mxu0 0.0
    %776 = vmatprep.subr.mxu0 0.0
    %777 = vmatpush1.msra.mxu0 0.0
    %778 = vmatprep.subr.mxu0 0.0
    %779 = vmatpush1.msra.mxu0 0.0
    %780 = vmatprep.subr.mxu0 0.0
    %781 = vmatpush1.msra.mxu0 0.0
    %782 = vmatprep.subr.mxu0 0.0
    %783 = vmatpush1.msra.mxu0 0.0
    %784 = vmatprep.subr.mxu0 0.0
    %785 = vmatpush1.msra.mxu0 0.0
    %786 = vmatprep.subr.mxu0 0.0
    %787 = vmatpush1.msra.mxu0 %v42
    %788 = vmatprep.subr.mxu0 0.0
    %789 = vmatpush1.msra.mxu0 %v41
    %790 = vmatprep.subr.mxu0 0.0
    %791 = vmatpush1.msra.mxu0 %v40
    %792 = vmatprep.subr.mxu0 0.0
    %793 = vmatpush1.msra.mxu0 %v39
    %794 = vmatprep.subr.mxu0 0.0
    %795 = vmatpush2.msra.mxu0 0.0
    %796 = vmatprep.subr.mxu0 0.0
    %797 = vmatpush2.msra.mxu0 0.0
    %798 = vmatprep.subr.mxu0 0.0
    %799 = vmatpush2.msra.mxu0 0.0
    %800 = vmatprep.subr.mxu0 0.0
    %801 = vmatpush2.msra.mxu0 0.0
    %802 = vmatprep.subr.mxu0 0.0
    %803 = vmatpush2.msra.mxu0 0.0
    %804 = vmatprep.subr.mxu0 0.0
    %805 = vmatpush2.msra.mxu0 0.0
    %806 = vmatprep.subr.mxu0 0.0
    %807 = vmatpush2.msra.mxu0 0.0
    %808 = vmatprep.subr.mxu0 0.0
    %809 = vmatpush2.msra.mxu0 0.0
    %810 = vmatprep.subr.mxu0 0.0
    %811 = vmatpush2.msra.mxu0 0.0
    %812 = vmatprep.subr.mxu0 0.0
    %813 = vmatpush2.msra.mxu0 0.0
    %814 = vmatprep.subr.mxu0 0.0
    %815 = vmatpush2.msra.mxu0 0.0
    %816 = vmatprep.subr.mxu0 0.0
    %817 = vmatpush2.msra.mxu0 0.0
    %818 = vmatprep.subr.mxu0 0.0
    %819 = vmatpush2.msra.mxu0 0.0
    %820 = vmatprep.subr.mxu0 0.0
    %821 = vmatpush2.msra.mxu0 0.0
    %822 = vmatprep.subr.mxu0 0.0
    %823 = vmatpush2.msra.mxu0 0.0
    %824 = vmatprep.subr.mxu0 0.0
    %825 = vmatpush2.msra.mxu0 0.0
    %826 = vmatprep.mubr.f32.mxu0 0.0
    %827 = vmatmul.mubr.f32.gmra.mxu0 %v760
    %v828 = vpop.f32.mrf.mxu0
    %v829 = vadd.f32 0.0, %v828
    %v830 = vpop.f32.mrf.mxu0
    %831 = vdwg.mxu0
    %v833 = vrot.slane %v829, 2
    %v835 = vadd.f32 %v122, %v833
    %v836 = vtanh.pop %v835
    %v837 = vrot.slane %v44, 2
    %v839 = vmul.f32 %v836, %v837
    %v840 = vrot.slane %v45, 2
    %v842 = vadd.f32 %v839, %v840
    %v844 = vrot.slane %v749, 7
    %v846 = vmul.f32 %v842, %v844
    %848 = vrot.lane.b32.xlu0 %v842, 64
    %v849 = vpop.permute.xlu0 %848
    %v851 = vmul.f32 %v842, %v849
    %853 = vrot.lane.b32.xlu0 %v851, 32
    %v854 = vpop.permute.xlu0 %853
    %v856 = vadd.f32 %v846, %v854
    %v857 = vtanh.pop %v856
    %859 = vrot.lane.b32.xlu0 %v857, 64
    %v860 = vpop.permute.xlu0 %859
    %v862 = vmul.f32 %v842, %v860
    %v864 = vrot.slane %v862, 6
    %865 = vrot.lane.b32.xlu0 %v864, 32
    %v866 = vpop.permute.xlu0 %865
    %v867 = vsel %vm125, %v866, 0
    %869 = vmatprep.subr.mxu0 0.0
    %870 = vmatpush1.msra.mxu0 0.0
    %871 = vmatprep.subr.mxu0 0.0
    %872 = vmatpush1.msra.mxu0 0.0
    %873 = vmatprep.subr.mxu0 0.0
    %874 = vmatpush1.msra.mxu0 0.0
    %875 = vmatprep.subr.mxu0 0.0
    %876 = vmatpush1.msra.mxu0 0.0
    %877 = vmatprep.subr.mxu0 0.0
    %878 = vmatpush1.msra.mxu0 0.0
    %879 = vmatprep.subr.mxu0 0.0
    %880 = vmatpush1.msra.mxu0 0.0
    %881 = vmatprep.subr.mxu0 0.0
    %882 = vmatpush1.msra.mxu0 0.0
    %883 = vmatprep.subr.mxu0 0.0
    %884 = vmatpush1.msra.mxu0 0.0
    %885 = vmatprep.subr.mxu0 0.0
    %886 = vmatpush1.msra.mxu0 0.0
    %887 = vmatprep.subr.mxu0 0.0
    %888 = vmatpush1.msra.mxu0 0.0
    %889 = vmatprep.subr.mxu0 0.0
    %890 = vmatpush1.msra.mxu0 0.0
    %891 = vmatprep.subr.mxu0 0.0
    %892 = vmatpush1.msra.mxu0 0.0
    %893 = vmatprep.subr.mxu0 0.0
    %894 = vmatpush1.msra.mxu0 %v42
    %895 = vmatprep.subr.mxu0 0.0
    %896 = vmatpush1.msra.mxu0 %v41
    %897 = vmatprep.subr.mxu0 0.0
    %898 = vmatpush1.msra.mxu0 %v40
    %899 = vmatprep.subr.mxu0 0.0
    %900 = vmatpush1.msra.mxu0 %v39
    %901 = vmatprep.subr.mxu0 0.0
    %902 = vmatpush2.msra.mxu0 0.0
    %903 = vmatprep.subr.mxu0 0.0
    %904 = vmatpush2.msra.mxu0 0.0
    %905 = vmatprep.subr.mxu0 0.0
    %906 = vmatpush2.msra.mxu0 0.0
    %907 = vmatprep.subr.mxu0 0.0
    %908 = vmatpush2.msra.mxu0 0.0
    %909 = vmatprep.subr.mxu0 0.0
    %910 = vmatpush2.msra.mxu0 0.0
    %911 = vmatprep.subr.mxu0 0.0
    %912 = vmatpush2.msra.mxu0 0.0
    %913 = vmatprep.subr.mxu0 0.0
    %914 = vmatpush2.msra.mxu0 0.0
    %915 = vmatprep.subr.mxu0 0.0
    %916 = vmatpush2.msra.mxu0 0.0
    %917 = vmatprep.subr.mxu0 0.0
    %918 = vmatpush2.msra.mxu0 0.0
    %919 = vmatprep.subr.mxu0 0.0
    %920 = vmatpush2.msra.mxu0 0.0
    %921 = vmatprep.subr.mxu0 0.0
    %922 = vmatpush2.msra.mxu0 0.0
    %923 = vmatprep.subr.mxu0 0.0
    %924 = vmatpush2.msra.mxu0 0.0
    %925 = vmatprep.subr.mxu0 0.0
    %926 = vmatpush2.msra.mxu0 0.0
    %927 = vmatprep.subr.mxu0 0.0
    %928 = vmatpush2.msra.mxu0 0.0
    %929 = vmatprep.subr.mxu0 0.0
    %930 = vmatpush2.msra.mxu0 0.0
    %931 = vmatprep.subr.mxu0 0.0
    %932 = vmatpush2.msra.mxu0 0.0
    %933 = vmatprep.mubr.f32.mxu0 0.0
    %934 = vmatmul.mubr.f32.gmra.mxu0 %v867
    %v935 = vpop.f32.mrf.mxu0
    %v936 = vadd.f32 0.0, %v935
    %v937 = vpop.f32.mrf.mxu0
    %938 = vdwg.mxu0
    %v940 = vrot.slane %v936, 1
    %v942 = vadd.f32 %v122, %v940
    %v943 = vtanh.pop %v942
    %v944 = vrot.slane %v44, 1
    %v946 = vmul.f32 %v943, %v944
    %v947 = vrot.slane %v45, 1
    %v949 = vadd.f32 %v946, %v947
    %v951 = vrot.slane %v856, 7
    %v953 = vmul.f32 %v949, %v951
    %955 = vrot.lane.b32.xlu0 %v949, 64
    %v956 = vpop.permute.xlu0 %955
    %v958 = vmul.f32 %v949, %v956
    %960 = vrot.lane.b32.xlu0 %v958, 32
    %v961 = vpop.permute.xlu0 %960
    %v963 = vadd.f32 %v953, %v961
    %v964 = vtanh.pop %v963
    %966 = vrot.lane.b32.xlu0 %v964, 64
    %v967 = vpop.permute.xlu0 %966
    %v969 = vmul.f32 %v949, %v967
    %v970 = vld [vmem:[#allocation5 + $0x2b] sm:$0x1]
    %v971 = vld [vmem:[#allocation5 + $0x2c] sm:$0x1]
    %v973 = vrot.slane %v970, 1
    %974 = vrot.lane.b32.xlu0 %v973, 96
    %v975 = vpop.permute.xlu0 %974
    %v977 = vmul.f32 %v969, %v975
    %979 = vrot.lane.b32.xlu0 %v977, 32
    %v980 = vpop.permute.xlu0 %979
    %vm982 = vcmask 261127
    %v983 = vsel %vm982, %v980, 0.0
    %984 = vadd.xlane.f32.xlu0 %v983
    %v985 = vpop.xlane.xlu0 %984
    %v987 = vrot.slane %v971, 1
    %v989 = vadd.f32 %v985, %v987
    %vm990 = vcmask 7175
    %991 = vst.msk [vmem:[#allocation7 - $0x7] sm:$0x80] %vm990, %v989
    // Predicated region
    $region18: #{lstm_model_forward.1} parent=1 // pred_check
      _
    $region19: #{lstm_model_forward.1} parent=1 // pred_check_branch
      %993 = sbr.rel (0) target = $region21
    $region20: #{lstm_model_forward.1} parent=1 // pred_region
      %s995 = ssub.s32 16, 16
      %996 = vsyncadd [#allocation4], %s995
      %s998 = sshll.u32 [#allocation7], 4
      %s999 = int_to_ptr.vmem [resolvable:$true] %s998
      %1001 = dma.vmem_to_hbm [thread:$0]  %s999, 16, %s2, [#allocation4]
    $region21: #{lstm_model_forward.1} parent=1 // pred_fallthru
      _
    // Predicated region
    $region22: #{lstm_model_forward.1} parent=1 // pred_check
      _
    $region23: #{lstm_model_forward.1} parent=1 // pred_check_branch
      %1003 = sbr.rel (0) target = $region25
    $region24: #{lstm_model_forward.1} parent=1 // pred_region
      %1004 = dma.done [#allocation4], 16
    $region25: #{lstm_model_forward.1} parent=1 // pred_fallthru
      _
    %1005 = vsyncpa [#allocation3], 1
    %1006 = vsyncpa [#allocation6], 1
    %1007 = vsyncpa [#allocation4], 1

</llo_original>
